<compile_context>
chip_gen: v7x
topology: tpu7x:2x2x1
jax: 0.10.0
libtpu: 0.0.40
codegen_flags: <defaults>
</compile_context>

<pallas_src>
import jax
import jax.numpy as jnp
import numpy as np
from jax.experimental import pallas as pl
from jax.experimental.pallas import tpu as pltpu


def lens_kernel(x_ref, wconv_ref, w1_ref, w2_ref, out_ref):
    # x_ref     : (TB, H*W)    bf16 frame block (0/1 spikes)
    # wconv_ref : (H*W, P)     bf16 fused im2col-permutation + conv taps
    # w1_ref    : (P, F)       f32 feature_layer weight (in, out)
    # w2_ref    : (F, O_pad)   f32 output_layer weight, zero-padded to 128 lanes
    # out_ref   : (TB, O_pad)  f32
    conv = jnp.dot(x_ref[...], wconv_ref[...],
                   preferred_element_type=jnp.float32)          # (TB, P) on MXU
    conv = jnp.maximum(conv, 0.0)                               # ReLU

    feat = jnp.dot(conv, w1_ref[...],
                   preferred_element_type=jnp.float32)          # (TB, F)
    feat = jnp.maximum(feat, 0.0)                               # ReLU

    out_ref[...] = jnp.dot(feat, w2_ref[...],
                           preferred_element_type=jnp.float32)  # (TB, O_pad)


def _build_fused_conv_weight(conv_w, H, W):
    """Fold the 8x8/stride-8 conv taps AND the NCHW->patch (im2col) permutation
    into a single dense weight of shape (H*W, Ho*Wo):
        Wconv[h*W + w, ho*Wo + wo] = k[h%8, w%8] * [h//8 == ho] * [w//8 == wo]
    so that  conv_out = x.reshape(T, H*W) @ Wconv  reproduces the PyTorch
    Conv2d(1,1,8,8,stride=8) output flattened row-major (same as nn.Flatten)."""
    Ho, Wo = H // 8, W // 8
    kh = conv_w.reshape(8, 8).astype(jnp.float32)
    h = jnp.arange(H)
    w = jnp.arange(W)
    taps = kh[h % 8][:, w % 8]                                        # (H, W)
    mask_h = (h[:, None] // 8 == jnp.arange(Ho)[None, :]).astype(jnp.float32)
    mask_w = (w[:, None] // 8 == jnp.arange(Wo)[None, :]).astype(jnp.float32)
    wconv = jnp.einsum('hw,hi,wj->hwij', taps, mask_h, mask_w)        # (H,W,Ho,Wo)
    return wconv.reshape(H * W, Ho * Wo)


def lens_forward(x_nchw, conv_w, w1, w2, *, tb=128):
    """x_nchw: (T, 1, H, W) spikes, conv_w: (1,1,8,8), w1: (P,F), w2: (F,O)."""
    T, C, H, W = x_nchw.shape
    assert C == 1 and H % 8 == 0 and W % 8 == 0
    Ho, Wo = H // 8, W // 8
    P = Ho * Wo
    HW = H * W
    F = w1.shape[1]
    O = w2.shape[1]
    O_pad = ((O + 127) // 128) * 128            # lane-dense output stores

    # Frame stream: (T, H*W) bf16. reshape is metadata-only; 0/1 spikes are
    # exact in bf16 and halve HBM traffic vs f32.
    x2d = x_nchw.reshape(T, HW)
    if x2d.dtype != jnp.bfloat16:
        x2d = x2d.astype(jnp.bfloat16)

    wconv = _build_fused_conv_weight(conv_w, H, W).astype(jnp.bfloat16)  # (HW, P)
    w1f = w1.astype(jnp.float32)                                          # (P, F)
    w2p = jnp.zeros((F, O_pad), jnp.float32).at[:, :O].set(
        w2.astype(jnp.float32))                                           # (F, O_pad)

    tb = min(tb, T)
    grid = (pl.cdiv(T, tb),)

    # Explicit VMEM budget: 2x double-buffered frame/output blocks + resident
    # weights + headroom.  (Re-derived from block sizes so it stays safe on
    # v7x's smaller 64 MiB physical VMEM for much larger TB.)
    x_blk = tb * HW * 2
    out_blk = tb * O_pad * 4
    wt_bytes = HW * P * 2 + P * F * 4 + F * O_pad * 4
    vmem_limit = max(2 * (x_blk + out_blk + wt_bytes) + (4 << 20), 16 << 20)

    out_full = pl.pallas_call(
        lens_kernel,
        out_shape=jax.ShapeDtypeStruct((T, O_pad), jnp.float32),
        grid=grid,
        in_specs=[
            pl.BlockSpec((tb, HW), lambda i: (i, 0)),      # streamed over T
            pl.BlockSpec((HW, P), lambda i: (0, 0)),       # resident weights
            pl.BlockSpec((P, F), lambda i: (0, 0)),
            pl.BlockSpec((F, O_pad), lambda i: (0, 0)),
        ],
        out_specs=pl.BlockSpec((tb, O_pad), lambda i: (i, 0)),
        compiler_params=pltpu.CompilerParams(
            dimension_semantics=("parallel",),             # megacore split over T
            vmem_limit_bytes=int(vmem_limit)),
    )(x2d, wconv, w1f, w2p)

    return out_full[:, :O]


def reference_forward(x_nchw, conv_w, w1, w2):
    """Pure-JAX f32 reference of the same analog path (for verification)."""
    T, _, H, W = x_nchw.shape
    Ho, Wo = H // 8, W // 8
    x = x_nchw.astype(jnp.float32).reshape(T, Ho, 8, Wo, 8)
    patches = jnp.transpose(x, (0, 1, 3, 2, 4)).reshape(T, Ho * Wo, 64)
    conv = jnp.maximum(
        jnp.einsum('tpk,k->tp', patches, conv_w.reshape(64).astype(jnp.float32),
                   precision=jax.lax.Precision.HIGHEST), 0.0)
    feat = jnp.maximum(
        jnp.matmul(conv, w1.astype(jnp.float32),
                   precision=jax.lax.Precision.HIGHEST), 0.0)
    return jnp.matmul(feat, w2.astype(jnp.float32),
                      precision=jax.lax.Precision.HIGHEST)


if __name__ == "__main__":
    # Config consistent with LENS.__init__:
    #   roi_dim = 16  -> conv output dims = 2 -> input = dims*dims = 4
    #   feature_multiplier = 8 -> feature = 32
    #   reference_places = 16 -> output = 16
    #   T = 512 frames (event stream), tiled in blocks of 128 over the grid.
    T, roi_dim = 512, 16
    dims = roi_dim // 8
    n_input = dims * dims          # 4
    n_feature = n_input * 8        # 32
    n_output = 16                  # reference_places

    key = jax.random.PRNGKey(0)
    kx, k1, k2 = jax.random.split(key, 3)

    # Input spikes (T, 1, roi_dim, roi_dim), NCHW like PyTorch; 0/1 in bf16.
    x = (jax.random.uniform(kx, (T, 1, roi_dim, roi_dim)) > 0.7).astype(jnp.bfloat16)

    # Conv kernel: zeros(1,1,8,8) with [0,0,3,3] = 1 (as in _init_kernel()).
    conv_w = jnp.zeros((1, 1, 8, 8), jnp.float32).at[0, 0, 3, 3].set(1.0)

    # SNNLayer weights (nn.Linear, bias=False); stored here as (in, out).
    w1 = jax.random.normal(k1, (n_input, n_feature), jnp.float32) * 0.1
    w2 = jax.random.normal(k2, (n_feature, n_output), jnp.float32) * 0.1

    out = lens_forward(x, conv_w, w1, w2, tb=128)
    out = jax.block_until_ready(out)

    ref = reference_forward(x, conv_w, w1, w2)
    np.testing.assert_allclose(np.asarray(out), np.asarray(ref),
                               rtol=1e-3, atol=1e-3)

    print("KERNEL_OK")
</pallas_src>

<mosaic_0001>
module attributes {stable_mosaic.version = 11 : i64} {
  func.func @lens_kernel(%arg0: i32, %arg1: memref<128x256xbf16, #tpu.memory_space<vmem>>, %arg2: memref<256x4xbf16, #tpu.memory_space<vmem>>, %arg3: memref<4x32xf32, #tpu.memory_space<vmem>>, %arg4: memref<32x128xf32, #tpu.memory_space<vmem>>, %arg5: memref<128x128xf32, #tpu.memory_space<vmem>>) attributes {dimension_semantics = [#tpu.dimension_semantics<parallel>], iteration_bounds = array<i64: 4>, scalar_prefetch = 0 : i64, scratch_operands = 0 : i64, tpu.core_type = #tpu.core_type<tc>, window_params = [{transform_indices = @transform_0, window_bounds = array<i64: 128, 256>}, {pipeline_mode = #tpu.pipeline_mode<synchronous>, transform_indices = @transform_1, window_bounds = array<i64: 256, 4>}, {pipeline_mode = #tpu.pipeline_mode<synchronous>, transform_indices = @transform_2, window_bounds = array<i64: 4, 32>}, {pipeline_mode = #tpu.pipeline_mode<synchronous>, transform_indices = @transform_3, window_bounds = array<i64: 32, 128>}, {transform_indices = @transform_4, window_bounds = array<i64: 128, 128>}]} {
    %c0 = arith.constant 0 : index
    %c0_0 = arith.constant 0 : index
    %0 = vector.load %arg1[%c0, %c0_0] : memref<128x256xbf16, #tpu.memory_space<vmem>>, vector<128x256xbf16>
    %c0_1 = arith.constant 0 : index
    %c0_2 = arith.constant 0 : index
    %1 = vector.load %arg2[%c0_1, %c0_2] : memref<256x4xbf16, #tpu.memory_space<vmem>>, vector<256x4xbf16>
    %cst = arith.constant dense<0.000000e+00> : vector<128x4xf32>
    %2 = tpu.matmul %0, %1, %cst {dimension_numbers = #tpu.dot_dimension_numbers<[1], [0], [0], [1], [0, 0, 1, 1], [], []>} : vector<128x256xbf16>, vector<256x4xbf16>, vector<128x4xf32> -> vector<128x4xf32>
    %cst_3 = arith.constant 0.000000e+00 : f32
    %3 = vector.broadcast %cst_3 : f32 to vector<128x4xf32>
    %4 = arith.maximumf %2, %3 : vector<128x4xf32>
    %c0_4 = arith.constant 0 : index
    %c0_5 = arith.constant 0 : index
    %5 = vector.load %arg3[%c0_4, %c0_5] : memref<4x32xf32, #tpu.memory_space<vmem>>, vector<4x32xf32>
    %cst_6 = arith.constant dense<0.000000e+00> : vector<128x32xf32>
    %6 = tpu.matmul %4, %5, %cst_6 {dimension_numbers = #tpu.dot_dimension_numbers<[1], [0], [0], [1], [0, 0, 1, 1], [], []>} : vector<128x4xf32>, vector<4x32xf32>, vector<128x32xf32> -> vector<128x32xf32>
    %cst_7 = arith.constant 0.000000e+00 : f32
    %7 = vector.broadcast %cst_7 : f32 to vector<128x32xf32>
    %8 = arith.maximumf %6, %7 : vector<128x32xf32>
    %c0_8 = arith.constant 0 : index
    %c0_9 = arith.constant 0 : index
    %9 = vector.load %arg4[%c0_8, %c0_9] : memref<32x128xf32, #tpu.memory_space<vmem>>, vector<32x128xf32>
    %cst_10 = arith.constant dense<0.000000e+00> : vector<128x128xf32>
    %10 = tpu.matmul %8, %9, %cst_10 {dimension_numbers = #tpu.dot_dimension_numbers<[1], [0], [0], [1], [0, 0, 1, 1], [], []>} : vector<128x32xf32>, vector<32x128xf32>, vector<128x128xf32> -> vector<128x128xf32>
    %c0_11 = arith.constant 0 : index
    %c0_12 = arith.constant 0 : index
    %11 = vector.load %arg5[%c0_11, %c0_12] : memref<128x128xf32, #tpu.memory_space<vmem>>, vector<128x128xf32>
    tpu.vector_store %arg5[%c0_11, %c0_12], %10 {strides = array<i32>} : memref<128x128xf32, #tpu.memory_space<vmem>>, vector<128x128xf32>,
    return
  }
  func.func @transform_0(%arg0: i32) -> (i32, i32) {
    %c0_i32 = arith.constant 0 : i32
    %c0_i32_0 = arith.constant 0 : i32
    return %arg0, %c0_i32 : i32, i32
  }
  func.func @transform_1(%arg0: i32) -> (i32, i32) {
    %c0_i32 = arith.constant 0 : i32
    %c0_i32_0 = arith.constant 0 : i32
    %c0_i32_1 = arith.constant 0 : i32
    return %c0_i32, %c0_i32_0 : i32, i32
  }
  func.func @transform_2(%arg0: i32) -> (i32, i32) {
    %c0_i32 = arith.constant 0 : i32
    %c0_i32_0 = arith.constant 0 : i32
    %c0_i32_1 = arith.constant 0 : i32
    return %c0_i32, %c0_i32_0 : i32, i32
  }
  func.func @transform_3(%arg0: i32) -> (i32, i32) {
    %c0_i32 = arith.constant 0 : i32
    %c0_i32_0 = arith.constant 0 : i32
    %c0_i32_1 = arith.constant 0 : i32
    return %c0_i32, %c0_i32_0 : i32, i32
  }
  func.func @transform_4(%arg0: i32) -> (i32, i32) {
    %c0_i32 = arith.constant 0 : i32
    %c0_i32_0 = arith.constant 0 : i32
    return %arg0, %c0_i32 : i32, i32
  }
}

</mosaic_0001>

<llo_original>
// kernel: tpu_custom_call.1
$region0: #{tpu_custom_call.1}
  #allocation0 [shape = 'u32[]', space=smem, size = 0x4, offset = 0x4, fixed_abs, tag = 'smem constant byte address 0x4 - core index']
  #allocation1 [shape = 'u32[144,128]{1,0:T(1,128)}', space=vmem, size = 0x12000, scoped, tag = 'internal scratch']
  %s0 = inlined_call_operand.hbm [shape: bf16[512,256], index: 0, kind: input, shape index: {}]
  %s1 = inlined_call_operand.vmem [shape: bf16[256,4], index: 1, kind: input, shape index: {}]
  %s2 = inlined_call_operand.vmem [shape: f32[4,32], index: 2, kind: input, shape index: {}]
  %s3 = inlined_call_operand.vmem [shape: f32[32,128], index: 3, kind: input, shape index: {}]
  %s4 = inlined_call_operand.hbm [shape: f32[512,128], index: 4, kind: output, shape index: {}]
  %s5 = sld [smem:[#allocation0]]
  $region53: #{tpu_custom_call.1} parent=0
    _
  %s7 = ssub.s32 1, %s5
  %s8 = scalar_select 0, %s7, %s5
  $region1: #{tpu_custom_call.1} parent=0
    #allocation2 [shape = 'u8[131072]{0}', space=vmem, size = 0x20000, scoped, tag = 'input window, operand 0']
    #allocation3 [shape = 's32[2]{0}', space=sflag, size = 0x8, scoped, tag = 'scoped memory for tpu_custom_call.1']
    #allocation4 [shape = 's32[2]{0}', space=sflag, size = 0x8, scoped, tag = 'scoped memory for tpu_custom_call.1']
    #allocation5 [shape = 'u8[131072]{0}', space=vmem, size = 0x20000, scoped, tag = 'output window, operand 0']
    %9 = vsyncpa [#allocation3], 0
    %s10 = scalar_lea.sflag [#allocation3], 1
    %11 = vsyncpa %s10, 0
    %12 = vsyncpa [#allocation4], 0
    %s13 = scalar_lea.sflag [#allocation4], 1
    %14 = vsyncpa %s13, 0
    loop: start=0, step=1, limit=6
    $region2: #{tpu_custom_call.1} parent=1 // loop_pre_header
      _
    $region3: #{tpu_custom_call.1} parent=1 // loop_header
      %s16 = sphi 0, %s20
      %p17 = scmp.ge.s32.totalorder %s16, 6
      %s26 = sphi 0, %s28
      %s29 = sphi 0, %s26
      %s30 = sphi 0, %s29
      %s46 = sphi 0, %s30
      %s50 = sphi 0, %s50
      %s52 = sphi 0, %s50
      %s53 = sphi 0, %s52
      %s67 = sphi 0, %s53
      %s71 = sphi 0, %s71
      %s73 = sphi 0, %s71
      %s74 = sphi 0, %s73
      %s88 = sphi 0, %s74
      %s92 = sphi 0, %s92
      %s94 = sphi 0, %s92
      %s95 = sphi 0, %s94
      %s109 = sphi 0, %s95
      %s115 = sphi 0, %s117
      %s118 = sphi 0, %s115
      %s119 = sphi 0, %s118
      %s135 = sphi 0, %s119
    $region4: #{tpu_custom_call.1} parent=1 // loop_header_branch
      %19 = sbr.rel (%p17) target = $region8
    $region5: #{tpu_custom_call.1} parent=1 // loop_body
      %s21 = ssub.s32 %s16, 1
      %s22 = ssub.s32 %s16, 2
      %s23 = sadd.s32 %s16, 1
      %s24 = ssub.s32 %s16, %s23
      %p25 = scmp.eq.s32.totalorder %s24, 0
      %s27 = sadd.s32 %s26, 1
      %s28 = scalar_select %p25, %s26, %s27
      %p31 = pneg %p25
      %p32 = scmp.eq.s32.totalorder %s16, 3
      %p33 = por %p31, %p32
      %p34 = scmp.ne.s32.totalorder %s26, %s29
      %p35 = scmp.eq.s32.totalorder %s16, 0
      %p36 = por %p34, %p35
      %p37 = scmp.ne.s32.totalorder %s26, %s29
      %p38 = scmp.eq.s32.totalorder %s21, 3
      %p39 = por %p37, %p38
      %p40 = scmp.ne.s32.totalorder %s29, %s30
      %p41 = scmp.eq.s32.totalorder %s21, 0
      %p42 = por %p40, %p41
      %p43 = scmp.ne.s32.totalorder %s29, %s30
      %p44 = scmp.eq.s32.totalorder %s22, 3
      %p45 = por %p43, %p44
      %p47 = scmp.ne.s32.totalorder %s30, %s46
      %p48 = scmp.eq.s32.totalorder %s22, 0
      %p49 = por %p47, %p48
      %s51 = sadd.s32 %s50, 1
      %p54 = scmp.eq.s32.totalorder %s16, 3
      %p55 = scmp.ne.s32.totalorder %s50, %s52
      %p56 = scmp.eq.s32.totalorder %s16, 0
      %p57 = por %p55, %p56
      %p58 = scmp.ne.s32.totalorder %s50, %s52
      %p59 = scmp.eq.s32.totalorder %s21, 3
      %p60 = por %p58, %p59
      %p61 = scmp.ne.s32.totalorder %s52, %s53
      %p62 = scmp.eq.s32.totalorder %s21, 0
      %p63 = por %p61, %p62
      %p64 = scmp.ne.s32.totalorder %s52, %s53
      %p65 = scmp.eq.s32.totalorder %s22, 3
      %p66 = por %p64, %p65
      %p68 = scmp.ne.s32.totalorder %s53, %s67
      %p69 = scmp.eq.s32.totalorder %s22, 0
      %p70 = por %p68, %p69
      %s72 = sadd.s32 %s71, 1
      %p75 = scmp.eq.s32.totalorder %s16, 3
      %p76 = scmp.ne.s32.totalorder %s71, %s73
      %p77 = scmp.eq.s32.totalorder %s16, 0
      %p78 = por %p76, %p77
      %p79 = scmp.ne.s32.totalorder %s71, %s73
      %p80 = scmp.eq.s32.totalorder %s21, 3
      %p81 = por %p79, %p80
      %p82 = scmp.ne.s32.totalorder %s73, %s74
      %p83 = scmp.eq.s32.totalorder %s21, 0
      %p84 = por %p82, %p83
      %p85 = scmp.ne.s32.totalorder %s73, %s74
      %p86 = scmp.eq.s32.totalorder %s22, 3
      %p87 = por %p85, %p86
      %p89 = scmp.ne.s32.totalorder %s74, %s88
      %p90 = scmp.eq.s32.totalorder %s22, 0
      %p91 = por %p89, %p90
      %s93 = sadd.s32 %s92, 1
      %p96 = scmp.eq.s32.totalorder %s16, 3
      %p97 = scmp.ne.s32.totalorder %s92, %s94
      %p98 = scmp.eq.s32.totalorder %s16, 0
      %p99 = por %p97, %p98
      %p100 = scmp.ne.s32.totalorder %s92, %s94
      %p101 = scmp.eq.s32.totalorder %s21, 3
      %p102 = por %p100, %p101
      %p103 = scmp.ne.s32.totalorder %s94, %s95
      %p104 = scmp.eq.s32.totalorder %s21, 0
      %p105 = por %p103, %p104
      %p106 = scmp.ne.s32.totalorder %s94, %s95
      %p107 = scmp.eq.s32.totalorder %s22, 3
      %p108 = por %p106, %p107
      %p110 = scmp.ne.s32.totalorder %s95, %s109
      %p111 = scmp.eq.s32.totalorder %s22, 0
      %p112 = por %p110, %p111
      %s113 = ssub.s32 %s16, %s23
      %p114 = scmp.eq.s32.totalorder %s113, 0
      %s116 = sadd.s32 %s115, 1
      %s117 = scalar_select %p114, %s115, %s116
      %p120 = pneg %p114
      %p121 = scmp.eq.s32.totalorder %s16, 3
      %p122 = por %p120, %p121
      %p123 = scmp.ne.s32.totalorder %s115, %s118
      %p124 = scmp.eq.s32.totalorder %s16, 0
      %p125 = por %p123, %p124
      %p126 = scmp.ne.s32.totalorder %s115, %s118
      %p127 = scmp.eq.s32.totalorder %s21, 3
      %p128 = por %p126, %p127
      %p129 = scmp.ne.s32.totalorder %s118, %s119
      %p130 = scmp.eq.s32.totalorder %s21, 0
      %p131 = por %p129, %p130
      %p132 = scmp.ne.s32.totalorder %s118, %s119
      %p133 = scmp.eq.s32.totalorder %s22, 3
      %p134 = por %p132, %p133
      %p136 = scmp.ne.s32.totalorder %s119, %s135
      %p137 = scmp.eq.s32.totalorder %s22, 0
      %p138 = por %p136, %p137
      %p139 = scmp.le.s32.totalorder 1, %s16
      %p140 = scmp.lt.s32.totalorder %s16, 5
      %p141 = pnand %p139, %p140
      %p142 = pneg %p141
      // Predicated region
      $region9: #{tpu_custom_call.1} parent=5 // pred_check
        _
      $region10: #{tpu_custom_call.1} parent=5 // pred_check_branch
        %144 = sbr.rel (%p141) target = $region12
      $region11: #{tpu_custom_call.1} parent=5 // pred_region
        %s145 = ssub.s32 %s16, 1
        // Predicated region
        $region13: #{tpu_custom_call.1} parent=11 // pred_check
          %p146 = pneg %p63
        $region14: #{tpu_custom_call.1} parent=11 // pred_check_branch
          %148 = sbr.rel (%p146) target = $region16
        $region15: #{tpu_custom_call.1} parent=11 // pred_region
          _
        $region16: #{tpu_custom_call.1} parent=11 // pred_fallthru
          _
        // Predicated region
        $region17: #{tpu_custom_call.1} parent=11 // pred_check
          %p149 = pneg %p84
        $region18: #{tpu_custom_call.1} parent=11 // pred_check_branch
          %151 = sbr.rel (%p149) target = $region20
        $region19: #{tpu_custom_call.1} parent=11 // pred_region
          _
        $region20: #{tpu_custom_call.1} parent=11 // pred_fallthru
          _
        // Predicated region
        $region21: #{tpu_custom_call.1} parent=11 // pred_check
          %p152 = pneg %p105
        $region22: #{tpu_custom_call.1} parent=11 // pred_check_branch
          %154 = sbr.rel (%p152) target = $region24
        $region23: #{tpu_custom_call.1} parent=11 // pred_region
          _
        $region24: #{tpu_custom_call.1} parent=11 // pred_fallthru
          _
      $region12: #{tpu_custom_call.1} parent=5 // pred_fallthru
        _
      %p155 = scmp.lt.s32.totalorder %s16, 4
      // Predicated region
      $region25: #{tpu_custom_call.1} parent=5 // pred_check
        %p156 = pneg %p155
      $region26: #{tpu_custom_call.1} parent=5 // pred_check_branch
        %158 = sbr.rel (%p156) target = $region28
      $region27: #{tpu_custom_call.1} parent=5 // pred_region
        // Predicated region
        $region29: #{tpu_custom_call.1} parent=27 // pred_check
          %p159 = pneg %p36
        $region30: #{tpu_custom_call.1} parent=27 // pred_check_branch
          %161 = sbr.rel (%p159) target = $region32
        $region31: #{tpu_custom_call.1} parent=27 // pred_region
          %s162 = sand.u32 %s26, 1
          %s163 = scalar_lea.sflag [#allocation3], %s162
          %s164 = sand.u32 %s26, 1
          %s165 = smul.addr %s164, 128
          %s166 = scalar_lea.vmem [#allocation2], %s165
          %s167 = smul.u32 16, %s16
          %s169 = ssub.s32 2048, 2048
          %170 = vsyncadd %s163, %s169
          %s171 = smul.addr %s167, 2
          %s172 = smul.addr %s171, 64
          %s173 = scalar_lea.hbm %s0, %s172
          %s174 = sshll.u32 %s166, 4
          %s175 = int_to_ptr.vmem [resolvable:$true] %s174
          %180 = dma.hbm_to_vmem [thread:$0]  %s173, 2048, %s175, %s163, 128, 128, 8
        $region32: #{tpu_custom_call.1} parent=27 // pred_fallthru
          _
      $region28: #{tpu_custom_call.1} parent=5 // pred_fallthru
        _
      %p181 = scmp.le.s32.totalorder 1, %s16
      %p182 = scmp.lt.s32.totalorder %s16, 5
      %p183 = pnand %p181, %p182
      %p184 = pneg %p183
      // Predicated region
      $region33: #{tpu_custom_call.1} parent=5 // pred_check
        _
      $region34: #{tpu_custom_call.1} parent=5 // pred_check_branch
        %186 = sbr.rel (%p183) target = $region36
      $region35: #{tpu_custom_call.1} parent=5 // pred_region
        %s187 = ssub.s32 %s16, 1
        %s188 = sand.u32 %s29, 1
        %s189 = scalar_lea.sflag [#allocation3], %s188
        %s190 = sand.u32 %s29, 1
        %s191 = smul.addr %s190, 128
        %s192 = scalar_lea.vmem [#allocation2], %s191
        // Predicated region
        $region37: #{tpu_custom_call.1} parent=35 // pred_check
          %p193 = pneg %p42
        $region38: #{tpu_custom_call.1} parent=35 // pred_check_branch
          %195 = sbr.rel (%p193) target = $region40
        $region39: #{tpu_custom_call.1} parent=35 // pred_region
          %196 = dma.done %s189, 2048
        $region40: #{tpu_custom_call.1} parent=35 // pred_fallthru
          _
        %s197 = sand.u32 %s29, 1
        %s198 = scalar_lea.sflag [#allocation3], %s197
        %s199 = sand.u32 %s29, 1
        %s200 = smul.addr %s199, 128
        %s201 = scalar_lea.vmem [#allocation2], %s200
        %p202 = pneg %p42
        %p203 = pneg %p39
        %p204 = pneg %p63
        %p205 = pneg %p60
        %p206 = pneg %p84
        %p207 = pneg %p81
        %p208 = pneg %p105
        %p209 = pneg %p102
        %p210 = pneg %p131
        %p211 = pneg %p128
        %s212 = sand.u32 %s118, 1
        %s213 = scalar_lea.sflag [#allocation4], %s212
        %s214 = sand.u32 %s118, 1
        %s215 = smul.addr %s214, 128
        %s216 = scalar_lea.vmem [#allocation5], %s215
        %s217 = smul.u32 16, %s21
        %s218 = smul.u32 16, %s21
        %v220 = vld [vmem:[%s192] sm:$0xff]
        %v221 = vld [vmem:[%s192 + $0x8] sm:$0xff]
        %v222 = vld [vmem:[%s192 + $0x10] sm:$0xff]
        %v223 = vld [vmem:[%s192 + $0x18] sm:$0xff]
        %v224 = vld [vmem:[%s192 + $0x20] sm:$0xff]
        %v225 = vld [vmem:[%s192 + $0x28] sm:$0xff]
        %v226 = vld [vmem:[%s192 + $0x30] sm:$0xff]
        %v227 = vld [vmem:[%s192 + $0x38] sm:$0xff]
        %v228 = vld [vmem:[%s192 + $0x40] sm:$0xff]
        %v229 = vld [vmem:[%s192 + $0x48] sm:$0xff]
        %v230 = vld [vmem:[%s192 + $0x50] sm:$0xff]
        %v231 = vld [vmem:[%s192 + $0x58] sm:$0xff]
        %v232 = vld [vmem:[%s192 + $0x60] sm:$0xff]
        %v233 = vld [vmem:[%s192 + $0x68] sm:$0xff]
        %v234 = vld [vmem:[%s192 + $0x70] sm:$0xff]
        %v235 = vld [vmem:[%s192 + $0x78] sm:$0xff]
        %v236 = vld [vmem:[%s1] sm:$0xf]
        %v237 = vld [vmem:[%s1 + $0x4] sm:$0xf]
        %v238 = vld [vmem:[%s1 + $0x8] sm:$0xf]
        %v239 = vld [vmem:[%s1 + $0xc] sm:$0xf]
        %v240 = vld [vmem:[%s1 + $0x10] sm:$0xf]
        %v241 = vld [vmem:[%s1 + $0x14] sm:$0xf]
        %v242 = vld [vmem:[%s1 + $0x18] sm:$0xf]
        %v243 = vld [vmem:[%s1 + $0x1c] sm:$0xf]
        %v244 = vld [vmem:[%s1 + $0x20] sm:$0xf]
        %v245 = vld [vmem:[%s1 + $0x24] sm:$0xf]
        %v246 = vld [vmem:[%s1 + $0x28] sm:$0xf]
        %v247 = vld [vmem:[%s1 + $0x2c] sm:$0xf]
        %v248 = vld [vmem:[%s1 + $0x30] sm:$0xf]
        %v249 = vld [vmem:[%s1 + $0x34] sm:$0xf]
        %v250 = vld [vmem:[%s1 + $0x38] sm:$0xf]
        %v251 = vld [vmem:[%s1 + $0x3c] sm:$0xf]
        %v252 = vld [vmem:[%s1 + $0x40] sm:$0xf]
        %v253 = vld [vmem:[%s1 + $0x44] sm:$0xf]
        %v254 = vld [vmem:[%s1 + $0x48] sm:$0xf]
        %v255 = vld [vmem:[%s1 + $0x4c] sm:$0xf]
        %v256 = vld [vmem:[%s1 + $0x50] sm:$0xf]
        %v257 = vld [vmem:[%s1 + $0x54] sm:$0xf]
        %v258 = vld [vmem:[%s1 + $0x58] sm:$0xf]
        %v259 = vld [vmem:[%s1 + $0x5c] sm:$0xf]
        %v260 = vld [vmem:[%s1 + $0x60] sm:$0xf]
        %v261 = vld [vmem:[%s1 + $0x64] sm:$0xf]
        %v262 = vld [vmem:[%s1 + $0x68] sm:$0xf]
        %v263 = vld [vmem:[%s1 + $0x6c] sm:$0xf]
        %v264 = vld [vmem:[%s1 + $0x70] sm:$0xf]
        %v265 = vld [vmem:[%s1 + $0x74] sm:$0xf]
        %v266 = vld [vmem:[%s1 + $0x78] sm:$0xf]
        %v267 = vld [vmem:[%s1 + $0x7c] sm:$0xf]
        %v284 = vunpack.c.l.b16 %v220
        %v285 = vunpack.c.h.b16 %v220
        %v286 = vunpack.c.l.b16 %v221
        %v287 = vunpack.c.h.b16 %v221
        %v288 = vunpack.c.l.b16 %v222
        %v289 = vunpack.c.h.b16 %v222
        %v290 = vunpack.c.l.b16 %v223
        %v291 = vunpack.c.h.b16 %v223
        %v292 = vunpack.c.l.b16 %v224
        %v293 = vunpack.c.h.b16 %v224
        %v294 = vunpack.c.l.b16 %v225
        %v295 = vunpack.c.h.b16 %v225
        %v296 = vunpack.c.l.b16 %v226
        %v297 = vunpack.c.h.b16 %v226
        %v298 = vunpack.c.l.b16 %v227
        %v299 = vunpack.c.h.b16 %v227
        %v300 = vunpack.c.l.b16 %v228
        %v301 = vunpack.c.h.b16 %v228
        %v302 = vunpack.c.l.b16 %v229
        %v303 = vunpack.c.h.b16 %v229
        %v304 = vunpack.c.l.b16 %v230
        %v305 = vunpack.c.h.b16 %v230
        %v306 = vunpack.c.l.b16 %v231
        %v307 = vunpack.c.h.b16 %v231
        %v308 = vunpack.c.l.b16 %v232
        %v309 = vunpack.c.h.b16 %v232
        %v310 = vunpack.c.l.b16 %v233
        %v311 = vunpack.c.h.b16 %v233
        %v312 = vunpack.c.l.b16 %v234
        %v313 = vunpack.c.h.b16 %v234
        %v314 = vunpack.c.l.b16 %v235
        %v315 = vunpack.c.h.b16 %v235
        %v316 = vpack.c.b16 %v286, %v284
        %v317 = vpack.c.b16 %v287, %v285
        %v318 = vpack.c.b16 %v290, %v288
        %v319 = vpack.c.b16 %v291, %v289
        %v320 = vpack.c.b16 %v294, %v292
        %v321 = vpack.c.b16 %v295, %v293
        %v322 = vpack.c.b16 %v298, %v296
        %v323 = vpack.c.b16 %v299, %v297
        %v324 = vpack.c.b16 %v302, %v300
        %v325 = vpack.c.b16 %v303, %v301
        %v326 = vpack.c.b16 %v306, %v304
        %v327 = vpack.c.b16 %v307, %v305
        %v328 = vpack.c.b16 %v310, %v308
        %v329 = vpack.c.b16 %v311, %v309
        %v330 = vpack.c.b16 %v314, %v312
        %v331 = vpack.c.b16 %v315, %v313
        %v380 = vunpack.c.l.b16 %v236
        %v381 = vunpack.c.l.b16 %v237
        %v382 = vunpack.c.l.b16 %v238
        %v383 = vunpack.c.l.b16 %v239
        %v384 = vunpack.c.l.b16 %v240
        %v385 = vunpack.c.l.b16 %v241
        %v386 = vunpack.c.l.b16 %v242
        %v387 = vunpack.c.l.b16 %v243
        %v388 = vunpack.c.l.b16 %v244
        %v389 = vunpack.c.l.b16 %v245
        %v390 = vunpack.c.l.b16 %v246
        %v391 = vunpack.c.l.b16 %v247
        %v392 = vunpack.c.l.b16 %v248
        %v393 = vunpack.c.l.b16 %v249
        %v394 = vunpack.c.l.b16 %v250
        %v395 = vunpack.c.l.b16 %v251
        %v396 = vunpack.c.l.b16 %v252
        %v397 = vunpack.c.l.b16 %v253
        %v398 = vunpack.c.l.b16 %v254
        %v399 = vunpack.c.l.b16 %v255
        %v400 = vunpack.c.l.b16 %v256
        %v401 = vunpack.c.l.b16 %v257
        %v402 = vunpack.c.l.b16 %v258
        %v403 = vunpack.c.l.b16 %v259
        %v404 = vunpack.c.l.b16 %v260
        %v405 = vunpack.c.l.b16 %v261
        %v406 = vunpack.c.l.b16 %v262
        %v407 = vunpack.c.l.b16 %v263
        %v408 = vunpack.c.l.b16 %v264
        %v409 = vunpack.c.l.b16 %v265
        %v410 = vunpack.c.l.b16 %v266
        %v411 = vunpack.c.l.b16 %v267
        %v412 = vpack.c.b16 %v381, %v380
        %v413 = vpack.c.b16 %v383, %v382
        %v414 = vpack.c.b16 %v385, %v384
        %v415 = vpack.c.b16 %v387, %v386
        %v416 = vpack.c.b16 %v389, %v388
        %v417 = vpack.c.b16 %v391, %v390
        %v418 = vpack.c.b16 %v393, %v392
        %v419 = vpack.c.b16 %v395, %v394
        %v420 = vpack.c.b16 %v397, %v396
        %v421 = vpack.c.b16 %v399, %v398
        %v422 = vpack.c.b16 %v401, %v400
        %v423 = vpack.c.b16 %v403, %v402
        %v424 = vpack.c.b16 %v405, %v404
        %v425 = vpack.c.b16 %v407, %v406
        %v426 = vpack.c.b16 %v409, %v408
        %v427 = vpack.c.b16 %v411, %v410
        %444 = vmatprep.subr.bf16.mxu0 0
        %445 = vmatpush1.bf16.msra.mxu0 %v412
        %446 = vmatprep.subr.bf16.mxu0 0
        %447 = vmatpush1.bf16.msra.mxu0 %v413
        %448 = vmatprep.subr.bf16.mxu0 0
        %449 = vmatpush1.bf16.msra.mxu0 %v414
        %450 = vmatprep.subr.bf16.mxu0 0
        %451 = vmatpush1.bf16.msra.mxu0 %v415
        %452 = vmatprep.subr.bf16.mxu0 0
        %453 = vmatpush1.bf16.msra.mxu0 %v416
        %454 = vmatprep.subr.bf16.mxu0 0
        %455 = vmatpush1.bf16.msra.mxu0 %v417
        %456 = vmatprep.subr.bf16.mxu0 0
        %457 = vmatpush1.bf16.msra.mxu0 %v418
        %458 = vmatprep.subr.bf16.mxu0 0
        %459 = vmatpush1.bf16.msra.mxu0 %v419
        %460 = vmatprep.subr.bf16.mxu0 0
        %461 = vmatpush1.bf16.msra.mxu0 %v420
        %462 = vmatprep.subr.bf16.mxu0 0
        %463 = vmatpush1.bf16.msra.mxu0 %v421
        %464 = vmatprep.subr.bf16.mxu0 0
        %465 = vmatpush1.bf16.msra.mxu0 %v422
        %466 = vmatprep.subr.bf16.mxu0 0
        %467 = vmatpush1.bf16.msra.mxu0 %v423
        %468 = vmatprep.subr.bf16.mxu0 0
        %469 = vmatpush1.bf16.msra.mxu0 %v424
        %470 = vmatprep.subr.bf16.mxu0 0
        %471 = vmatpush1.bf16.msra.mxu0 %v425
        %472 = vmatprep.subr.bf16.mxu0 0
        %473 = vmatpush1.bf16.msra.mxu0 %v426
        %474 = vmatprep.subr.bf16.mxu0 0
        %475 = vmatpush1.bf16.msra.mxu0 %v427
        %476 = vmatprep.mubr.bf16.mxu0 %v317
        %477 = vmatmul.mubr.bf16.gmra.mrb[0].mxu0 %v316
        %v478 = vpop.f32.mrb[0].mxu0
        %v479 = vadd.f32 0.0, %v478
        %v480 = vpop.f32.mrb[0].mxu0
        %v481 = vpop.f32.mrb[0].mxu0
        %v482 = vadd.f32 0.0, %v481
        %v483 = vpop.f32.mrb[0].mxu0
        %484 = vmatprep.mubr.bf16.mxu0 %v319
        %485 = vmatmul.mubr.bf16.gmra.mrb[0].mxu0 %v318
        %v486 = vpop.f32.mrb[0].mxu0
        %v487 = vadd.f32 0.0, %v486
        %v488 = vpop.f32.mrb[0].mxu0
        %v489 = vpop.f32.mrb[0].mxu0
        %v490 = vadd.f32 0.0, %v489
        %v491 = vpop.f32.mrb[0].mxu0
        %492 = vmatprep.mubr.bf16.mxu0 %v321
        %493 = vmatmul.mubr.bf16.gmra.mrb[0].mxu0 %v320
        %v494 = vpop.f32.mrb[0].mxu0
        %v495 = vadd.f32 0.0, %v494
        %v496 = vpop.f32.mrb[0].mxu0
        %v497 = vpop.f32.mrb[0].mxu0
        %v498 = vadd.f32 0.0, %v497
        %v499 = vpop.f32.mrb[0].mxu0
        %500 = vmatprep.mubr.bf16.mxu0 %v323
        %501 = vmatmul.mubr.bf16.gmra.mrb[0].mxu0 %v322
        %v502 = vpop.f32.mrb[0].mxu0
        %v503 = vadd.f32 0.0, %v502
        %v504 = vpop.f32.mrb[0].mxu0
        %v505 = vpop.f32.mrb[0].mxu0
        %v506 = vadd.f32 0.0, %v505
        %v507 = vpop.f32.mrb[0].mxu0
        %508 = vmatprep.mubr.bf16.mxu0 %v325
        %509 = vmatmul.mubr.bf16.gmra.mrb[0].mxu0 %v324
        %v510 = vpop.f32.mrb[0].mxu0
        %v511 = vadd.f32 0.0, %v510
        %v512 = vpop.f32.mrb[0].mxu0
        %v513 = vpop.f32.mrb[0].mxu0
        %v514 = vadd.f32 0.0, %v513
        %v515 = vpop.f32.mrb[0].mxu0
        %516 = vmatprep.mubr.bf16.mxu0 %v327
        %517 = vmatmul.mubr.bf16.gmra.mrb[0].mxu0 %v326
        %v518 = vpop.f32.mrb[0].mxu0
        %v519 = vadd.f32 0.0, %v518
        %v520 = vpop.f32.mrb[0].mxu0
        %v521 = vpop.f32.mrb[0].mxu0
        %v522 = vadd.f32 0.0, %v521
        %v523 = vpop.f32.mrb[0].mxu0
        %524 = vmatprep.mubr.bf16.mxu0 %v329
        %525 = vmatmul.mubr.bf16.gmra.mrb[0].mxu0 %v328
        %v526 = vpop.f32.mrb[0].mxu0
        %v527 = vadd.f32 0.0, %v526
        %v528 = vpop.f32.mrb[0].mxu0
        %v529 = vpop.f32.mrb[0].mxu0
        %v530 = vadd.f32 0.0, %v529
        %v531 = vpop.f32.mrb[0].mxu0
        %532 = vmatprep.mubr.bf16.mxu0 %v331
        %533 = vmatmul.mubr.bf16.gmra.mrb[0].mxu0 %v330
        %v534 = vpop.f32.mrb[0].mxu0
        %v535 = vadd.f32 0.0, %v534
        %v536 = vpop.f32.mrb[0].mxu0
        %v537 = vpop.f32.mrb[0].mxu0
        %v538 = vadd.f32 0.0, %v537
        %v539 = vpop.f32.mrb[0].mxu0
        %540 = vdwg.mxu0
        %v541 = vmax.f32 %v479, 0.0
        %v542 = vmax.f32 %v482, 0.0
        %v543 = vmax.f32 %v487, 0.0
        %v544 = vmax.f32 %v490, 0.0
        %v545 = vmax.f32 %v495, 0.0
        %v546 = vmax.f32 %v498, 0.0
        %v547 = vmax.f32 %v503, 0.0
        %v548 = vmax.f32 %v506, 0.0
        %v549 = vmax.f32 %v511, 0.0
        %v550 = vmax.f32 %v514, 0.0
        %v551 = vmax.f32 %v519, 0.0
        %v552 = vmax.f32 %v522, 0.0
        %v553 = vmax.f32 %v527, 0.0
        %v554 = vmax.f32 %v530, 0.0
        %v555 = vmax.f32 %v535, 0.0
        %v556 = vmax.f32 %v538, 0.0
        %v557 = vld [vmem:[%s2] sm:$0xf]
        %vm558 = vcmask 31744
        %v560 = vsel %vm558, %v541, 0
        %v563 = vsel %vm558, %v542, 0
        %v566 = vsel %vm558, %v543, 0
        %v569 = vsel %vm558, %v544, 0
        %v572 = vsel %vm558, %v545, 0
        %v575 = vsel %vm558, %v546, 0
        %v578 = vsel %vm558, %v547, 0
        %v581 = vsel %vm558, %v548, 0
        %v584 = vsel %vm558, %v549, 0
        %v587 = vsel %vm558, %v550, 0
        %v590 = vsel %vm558, %v551, 0
        %v593 = vsel %vm558, %v552, 0
        %v596 = vsel %vm558, %v553, 0
        %v599 = vsel %vm558, %v554, 0
        %v602 = vsel %vm558, %v555, 0
        %v605 = vsel %vm558, %v556, 0
        %vm607 = vcmask 1043456
        %v609 = vsel %vm607, %v557, 0
        %611 = vmatprep.subr.mxu0 0.0
        %612 = vmatpush1.msra.mxu0 %v609
        %613 = vmatprep.subr.mxu0 0.0
        %614 = vmatpush1.msra.mxu0 0.0
        %615 = vmatprep.subr.mxu0 0.0
        %616 = vmatpush1.msra.mxu0 0.0
        %617 = vmatprep.subr.mxu0 0.0
        %618 = vmatpush1.msra.mxu0 0.0
        %619 = vmatprep.subr.mxu0 0.0
        %620 = vmatpush1.msra.mxu0 0.0
        %621 = vmatprep.subr.mxu0 0.0
        %622 = vmatpush1.msra.mxu0 0.0
        %623 = vmatprep.subr.mxu0 0.0
        %624 = vmatpush1.msra.mxu0 0.0
        %625 = vmatprep.subr.mxu0 0.0
        %626 = vmatpush1.msra.mxu0 0.0
        %627 = vmatprep.subr.mxu0 0.0
        %628 = vmatpush1.msra.mxu0 0.0
        %629 = vmatprep.subr.mxu0 0.0
        %630 = vmatpush1.msra.mxu0 0.0
        %631 = vmatprep.subr.mxu0 0.0
        %632 = vmatpush1.msra.mxu0 0.0
        %633 = vmatprep.subr.mxu0 0.0
        %634 = vmatpush1.msra.mxu0 0.0
        %635 = vmatprep.subr.mxu0 0.0
        %636 = vmatpush1.msra.mxu0 0.0
        %637 = vmatprep.subr.mxu0 0.0
        %638 = vmatpush1.msra.mxu0 0.0
        %639 = vmatprep.subr.mxu0 0.0
        %640 = vmatpush1.msra.mxu0 0.0
        %641 = vmatprep.subr.mxu0 0.0
        %642 = vmatpush1.msra.mxu0 0.0
        %643 = vmatprep.subr.mxu0 0.0
        %644 = vmatpush1.msra.mxu0 0.0
        %645 = vmatprep.subr.mxu0 0.0
        %646 = vmatpush1.msra.mxu0 0.0
        %647 = vmatprep.subr.mxu0 0.0
        %648 = vmatpush1.msra.mxu0 0.0
        %649 = vmatprep.subr.mxu0 0.0
        %650 = vmatpush1.msra.mxu0 0.0
        %651 = vmatprep.subr.mxu0 0.0
        %652 = vmatpush1.msra.mxu0 0.0
        %653 = vmatprep.subr.mxu0 0.0
        %654 = vmatpush1.msra.mxu0 0.0
        %655 = vmatprep.subr.mxu0 0.0
        %656 = vmatpush1.msra.mxu0 0.0
        %657 = vmatprep.subr.mxu0 0.0
        %658 = vmatpush1.msra.mxu0 0.0
        %659 = vmatprep.subr.mxu0 0.0
        %660 = vmatpush1.msra.mxu0 0.0
        %661 = vmatprep.subr.mxu0 0.0
        %662 = vmatpush1.msra.mxu0 0.0
        %663 = vmatprep.subr.mxu0 0.0
        %664 = vmatpush1.msra.mxu0 0.0
        %665 = vmatprep.subr.mxu0 0.0
        %666 = vmatpush1.msra.mxu0 0.0
        %667 = vmatprep.subr.mxu0 0.0
        %668 = vmatpush1.msra.mxu0 0.0
        %669 = vmatprep.subr.mxu0 0.0
        %670 = vmatpush1.msra.mxu0 0.0
        %671 = vmatprep.subr.mxu0 0.0
        %672 = vmatpush1.msra.mxu0 0.0
        %673 = vmatprep.subr.mxu0 0.0
        %674 = vmatpush1.msra.mxu0 0.0
        %675 = vmatprep.mubr.f32.mxu0 0.0
        %676 = vmatmul.mubr.f32.gmra.mrb[0].mxu0 %v560
        %v677 = vpop.f32.mrb[0].mxu0
        %v678 = vadd.f32 0.0, %v677
        %v679 = vpop.f32.mrb[0].mxu0
        %680 = vmatprep.mubr.f32.mxu0 0.0
        %681 = vmatmul.mubr.f32.gmra.mrb[0].mxu0 %v563
        %v682 = vpop.f32.mrb[0].mxu0
        %v683 = vadd.f32 0.0, %v682
        %v684 = vpop.f32.mrb[0].mxu0
        %685 = vmatprep.mubr.f32.mxu0 0.0
        %686 = vmatmul.mubr.f32.gmra.mrb[0].mxu0 %v566
        %v687 = vpop.f32.mrb[0].mxu0
        %v688 = vadd.f32 0.0, %v687
        %v689 = vpop.f32.mrb[0].mxu0
        %690 = vmatprep.mubr.f32.mxu0 0.0
        %691 = vmatmul.mubr.f32.gmra.mrb[0].mxu0 %v569
        %v692 = vpop.f32.mrb[0].mxu0
        %v693 = vadd.f32 0.0, %v692
        %v694 = vpop.f32.mrb[0].mxu0
        %695 = vmatprep.mubr.f32.mxu0 0.0
        %696 = vmatmul.mubr.f32.gmra.mrb[0].mxu0 %v572
        %v697 = vpop.f32.mrb[0].mxu0
        %v698 = vadd.f32 0.0, %v697
        %v699 = vpop.f32.mrb[0].mxu0
        %700 = vmatprep.mubr.f32.mxu0 0.0
        %701 = vmatmul.mubr.f32.gmra.mrb[0].mxu0 %v575
        %v702 = vpop.f32.mrb[0].mxu0
        %v703 = vadd.f32 0.0, %v702
        %v704 = vpop.f32.mrb[0].mxu0
        %705 = vmatprep.mubr.f32.mxu0 0.0
        %706 = vmatmul.mubr.f32.gmra.mrb[0].mxu0 %v578
        %v707 = vpop.f32.mrb[0].mxu0
        %v708 = vadd.f32 0.0, %v707
        %v709 = vpop.f32.mrb[0].mxu0
        %710 = vmatprep.mubr.f32.mxu0 0.0
        %711 = vmatmul.mubr.f32.gmra.mrb[0].mxu0 %v581
        %v712 = vpop.f32.mrb[0].mxu0
        %v713 = vadd.f32 0.0, %v712
        %v714 = vpop.f32.mrb[0].mxu0
        %715 = vmatprep.mubr.f32.mxu0 0.0
        %716 = vmatmul.mubr.f32.gmra.mrb[0].mxu0 %v584
        %v717 = vpop.f32.mrb[0].mxu0
        %v718 = vadd.f32 0.0, %v717
        %v719 = vpop.f32.mrb[0].mxu0
        %720 = vmatprep.mubr.f32.mxu0 0.0
        %721 = vmatmul.mubr.f32.gmra.mrb[0].mxu0 %v587
        %v722 = vpop.f32.mrb[0].mxu0
        %v723 = vadd.f32 0.0, %v722
        %v724 = vpop.f32.mrb[0].mxu0
        %725 = vmatprep.mubr.f32.mxu0 0.0
        %726 = vmatmul.mubr.f32.gmra.mrb[0].mxu0 %v590
        %v727 = vpop.f32.mrb[0].mxu0
        %v728 = vadd.f32 0.0, %v727
        %v729 = vpop.f32.mrb[0].mxu0
        %730 = vmatprep.mubr.f32.mxu0 0.0
        %731 = vmatmul.mubr.f32.gmra.mrb[0].mxu0 %v593
        %v732 = vpop.f32.mrb[0].mxu0
        %v733 = vadd.f32 0.0, %v732
        %v734 = vpop.f32.mrb[0].mxu0
        %735 = vmatprep.mubr.f32.mxu0 0.0
        %736 = vmatmul.mubr.f32.gmra.mrb[0].mxu0 %v596
        %v737 = vpop.f32.mrb[0].mxu0
        %v738 = vadd.f32 0.0, %v737
        %v739 = vpop.f32.mrb[0].mxu0
        %740 = vmatprep.mubr.f32.mxu0 0.0
        %741 = vmatmul.mubr.f32.gmra.mrb[0].mxu0 %v599
        %v742 = vpop.f32.mrb[0].mxu0
        %v743 = vadd.f32 0.0, %v742
        %v744 = vpop.f32.mrb[0].mxu0
        %745 = vmatprep.mubr.f32.mxu0 0.0
        %746 = vmatmul.mubr.f32.gmra.mrb[0].mxu0 %v602
        %v747 = vpop.f32.mrb[0].mxu0
        %v748 = vadd.f32 0.0, %v747
        %v749 = vpop.f32.mrb[0].mxu0
        %750 = vmatprep.mubr.f32.mxu0 0.0
        %751 = vmatmul.mubr.f32.gmra.mrb[0].mxu0 %v605
        %v752 = vpop.f32.mrb[0].mxu0
        %v753 = vadd.f32 0.0, %v752
        %v754 = vpop.f32.mrb[0].mxu0
        %755 = vdwg.mxu0
        %v756 = vmax.f32 %v678, 0.0
        %v757 = vmax.f32 %v683, 0.0
        %v758 = vmax.f32 %v688, 0.0
        %v759 = vmax.f32 %v693, 0.0
        %v760 = vmax.f32 %v698, 0.0
        %v761 = vmax.f32 %v703, 0.0
        %v762 = vmax.f32 %v708, 0.0
        %v763 = vmax.f32 %v713, 0.0
        %v764 = vmax.f32 %v718, 0.0
        %v765 = vmax.f32 %v723, 0.0
        %v766 = vmax.f32 %v728, 0.0
        %v767 = vmax.f32 %v733, 0.0
        %v768 = vmax.f32 %v738, 0.0
        %v769 = vmax.f32 %v743, 0.0
        %v770 = vmax.f32 %v748, 0.0
        %v771 = vmax.f32 %v753, 0.0
        %v772 = vld [vmem:[%s3] sm:$0xff]
        %v773 = vld [vmem:[%s3 + $0x8] sm:$0xff]
        %v774 = vld [vmem:[%s3 + $0x10] sm:$0xff]
        %v775 = vld [vmem:[%s3 + $0x18] sm:$0xff]
        %vm776 = vcmask 261120
        %v778 = vsel %vm776, %v756, 0
        %v781 = vsel %vm776, %v757, 0
        %v784 = vsel %vm776, %v758, 0
        %v787 = vsel %vm776, %v759, 0
        %v790 = vsel %vm776, %v760, 0
        %v793 = vsel %vm776, %v761, 0
        %v796 = vsel %vm776, %v762, 0
        %v799 = vsel %vm776, %v763, 0
        %v802 = vsel %vm776, %v764, 0
        %v805 = vsel %vm776, %v765, 0
        %v808 = vsel %vm776, %v766, 0
        %v811 = vsel %vm776, %v767, 0
        %v814 = vsel %vm776, %v768, 0
        %v817 = vsel %vm776, %v769, 0
        %v820 = vsel %vm776, %v770, 0
        %v823 = vsel %vm776, %v771, 0
        %825 = vmatprep.subr.mxu0 0.0
        %826 = vmatpush1.msra.mxu0 %v772
        %827 = vmatprep.subr.mxu0 0.0
        %828 = vmatpush1.msra.mxu0 %v773
        %829 = vmatprep.subr.mxu0 0.0
        %830 = vmatpush1.msra.mxu0 %v774
        %831 = vmatprep.subr.mxu0 0.0
        %832 = vmatpush1.msra.mxu0 %v775
        %833 = vmatprep.subr.mxu0 0.0
        %834 = vmatpush1.msra.mxu0 0.0
        %835 = vmatprep.subr.mxu0 0.0
        %836 = vmatpush1.msra.mxu0 0.0
        %837 = vmatprep.subr.mxu0 0.0
        %838 = vmatpush1.msra.mxu0 0.0
        %839 = vmatprep.subr.mxu0 0.0
        %840 = vmatpush1.msra.mxu0 0.0
        %841 = vmatprep.subr.mxu0 0.0
        %842 = vmatpush1.msra.mxu0 0.0
        %843 = vmatprep.subr.mxu0 0.0
        %844 = vmatpush1.msra.mxu0 0.0
        %845 = vmatprep.subr.mxu0 0.0
        %846 = vmatpush1.msra.mxu0 0.0
        %847 = vmatprep.subr.mxu0 0.0
        %848 = vmatpush1.msra.mxu0 0.0
        %849 = vmatprep.subr.mxu0 0.0
        %850 = vmatpush1.msra.mxu0 0.0
        %851 = vmatprep.subr.mxu0 0.0
        %852 = vmatpush1.msra.mxu0 0.0
        %853 = vmatprep.subr.mxu0 0.0
        %854 = vmatpush1.msra.mxu0 0.0
        %855 = vmatprep.subr.mxu0 0.0
        %856 = vmatpush1.msra.mxu0 0.0
        %857 = vmatprep.subr.mxu0 0.0
        %858 = vmatpush1.msra.mxu0 0.0
        %859 = vmatprep.subr.mxu0 0.0
        %860 = vmatpush1.msra.mxu0 0.0
        %861 = vmatprep.subr.mxu0 0.0
        %862 = vmatpush1.msra.mxu0 0.0
        %863 = vmatprep.subr.mxu0 0.0
        %864 = vmatpush1.msra.mxu0 0.0
        %865 = vmatprep.subr.mxu0 0.0
        %866 = vmatpush1.msra.mxu0 0.0
        %867 = vmatprep.subr.mxu0 0.0
        %868 = vmatpush1.msra.mxu0 0.0
        %869 = vmatprep.subr.mxu0 0.0
        %870 = vmatpush1.msra.mxu0 0.0
        %871 = vmatprep.subr.mxu0 0.0
        %872 = vmatpush1.msra.mxu0 0.0
        %873 = vmatprep.subr.mxu0 0.0
        %874 = vmatpush1.msra.mxu0 0.0
        %875 = vmatprep.subr.mxu0 0.0
        %876 = vmatpush1.msra.mxu0 0.0
        %877 = vmatprep.subr.mxu0 0.0
        %878 = vmatpush1.msra.mxu0 0.0
        %879 = vmatprep.subr.mxu0 0.0
        %880 = vmatpush1.msra.mxu0 0.0
        %881 = vmatprep.subr.mxu0 0.0
        %882 = vmatpush1.msra.mxu0 0.0
        %883 = vmatprep.subr.mxu0 0.0
        %884 = vmatpush1.msra.mxu0 0.0
        %885 = vmatprep.subr.mxu0 0.0
        %886 = vmatpush1.msra.mxu0 0.0
        %887 = vmatprep.subr.mxu0 0.0
        %888 = vmatpush1.msra.mxu0 0.0
        %889 = vmatprep.mubr.f32.mxu0 0.0
        %890 = vmatmul.mubr.f32.gmra.mrb[0].mxu0 %v778
        %v891 = vpop.f32.mrb[0].mxu0
        %v892 = vadd.f32 0.0, %v891
        %v893 = vpop.f32.mrb[0].mxu0
        %894 = vmatprep.mubr.f32.mxu0 0.0
        %895 = vmatmul.mubr.f32.gmra.mrb[0].mxu0 %v781
        %v896 = vpop.f32.mrb[0].mxu0
        %v897 = vadd.f32 0.0, %v896
        %v898 = vpop.f32.mrb[0].mxu0
        %899 = vmatprep.mubr.f32.mxu0 0.0
        %900 = vmatmul.mubr.f32.gmra.mrb[0].mxu0 %v784
        %v901 = vpop.f32.mrb[0].mxu0
        %v902 = vadd.f32 0.0, %v901
        %v903 = vpop.f32.mrb[0].mxu0
        %904 = vmatprep.mubr.f32.mxu0 0.0
        %905 = vmatmul.mubr.f32.gmra.mrb[0].mxu0 %v787
        %v906 = vpop.f32.mrb[0].mxu0
        %v907 = vadd.f32 0.0, %v906
        %v908 = vpop.f32.mrb[0].mxu0
        %909 = vmatprep.mubr.f32.mxu0 0.0
        %910 = vmatmul.mubr.f32.gmra.mrb[0].mxu0 %v790
        %v911 = vpop.f32.mrb[0].mxu0
        %v912 = vadd.f32 0.0, %v911
        %v913 = vpop.f32.mrb[0].mxu0
        %914 = vmatprep.mubr.f32.mxu0 0.0
        %915 = vmatmul.mubr.f32.gmra.mrb[0].mxu0 %v793
        %v916 = vpop.f32.mrb[0].mxu0
        %v917 = vadd.f32 0.0, %v916
        %v918 = vpop.f32.mrb[0].mxu0
        %919 = vmatprep.mubr.f32.mxu0 0.0
        %920 = vmatmul.mubr.f32.gmra.mrb[0].mxu0 %v796
        %v921 = vpop.f32.mrb[0].mxu0
        %v922 = vadd.f32 0.0, %v921
        %v923 = vpop.f32.mrb[0].mxu0
        %924 = vmatprep.mubr.f32.mxu0 0.0
        %925 = vmatmul.mubr.f32.gmra.mrb[0].mxu0 %v799
        %v926 = vpop.f32.mrb[0].mxu0
        %v927 = vadd.f32 0.0, %v926
        %v928 = vpop.f32.mrb[0].mxu0
        %929 = vmatprep.mubr.f32.mxu0 0.0
        %930 = vmatmul.mubr.f32.gmra.mrb[0].mxu0 %v802
        %v931 = vpop.f32.mrb[0].mxu0
        %v932 = vadd.f32 0.0, %v931
        %v933 = vpop.f32.mrb[0].mxu0
        %934 = vmatprep.mubr.f32.mxu0 0.0
        %935 = vmatmul.mubr.f32.gmra.mrb[0].mxu0 %v805
        %v936 = vpop.f32.mrb[0].mxu0
        %v937 = vadd.f32 0.0, %v936
        %v938 = vpop.f32.mrb[0].mxu0
        %939 = vmatprep.mubr.f32.mxu0 0.0
        %940 = vmatmul.mubr.f32.gmra.mrb[0].mxu0 %v808
        %v941 = vpop.f32.mrb[0].mxu0
        %v942 = vadd.f32 0.0, %v941
        %v943 = vpop.f32.mrb[0].mxu0
        %944 = vmatprep.mubr.f32.mxu0 0.0
        %945 = vmatmul.mubr.f32.gmra.mrb[0].mxu0 %v811
        %v946 = vpop.f32.mrb[0].mxu0
        %v947 = vadd.f32 0.0, %v946
        %v948 = vpop.f32.mrb[0].mxu0
        %949 = vmatprep.mubr.f32.mxu0 0.0
        %950 = vmatmul.mubr.f32.gmra.mrb[0].mxu0 %v814
        %v951 = vpop.f32.mrb[0].mxu0
        %v952 = vadd.f32 0.0, %v951
        %v953 = vpop.f32.mrb[0].mxu0
        %954 = vmatprep.mubr.f32.mxu0 0.0
        %955 = vmatmul.mubr.f32.gmra.mrb[0].mxu0 %v817
        %v956 = vpop.f32.mrb[0].mxu0
        %v957 = vadd.f32 0.0, %v956
        %v958 = vpop.f32.mrb[0].mxu0
        %959 = vmatprep.mubr.f32.mxu0 0.0
        %960 = vmatmul.mubr.f32.gmra.mrb[0].mxu0 %v820
        %v961 = vpop.f32.mrb[0].mxu0
        %v962 = vadd.f32 0.0, %v961
        %v963 = vpop.f32.mrb[0].mxu0
        %964 = vmatprep.mubr.f32.mxu0 0.0
        %965 = vmatmul.mubr.f32.gmra.mrb[0].mxu0 %v823
        %v966 = vpop.f32.mrb[0].mxu0
        %v967 = vadd.f32 0.0, %v966
        %v968 = vpop.f32.mrb[0].mxu0
        %969 = vdwg.mxu0
        %970 = vst [vmem:[%s216] sm:$0xff] %v892
        %971 = vst [vmem:[%s216 + $0x8] sm:$0xff] %v897
        %972 = vst [vmem:[%s216 + $0x10] sm:$0xff] %v902
        %973 = vst [vmem:[%s216 + $0x18] sm:$0xff] %v907
        %974 = vst [vmem:[%s216 + $0x20] sm:$0xff] %v912
        %975 = vst [vmem:[%s216 + $0x28] sm:$0xff] %v917
        %976 = vst [vmem:[%s216 + $0x30] sm:$0xff] %v922
        %977 = vst [vmem:[%s216 + $0x38] sm:$0xff] %v927
        %978 = vst [vmem:[%s216 + $0x40] sm:$0xff] %v932
        %979 = vst [vmem:[%s216 + $0x48] sm:$0xff] %v937
        %980 = vst [vmem:[%s216 + $0x50] sm:$0xff] %v942
        %981 = vst [vmem:[%s216 + $0x58] sm:$0xff] %v947
        %982 = vst [vmem:[%s216 + $0x60] sm:$0xff] %v952
        %983 = vst [vmem:[%s216 + $0x68] sm:$0xff] %v957
        %984 = vst [vmem:[%s216 + $0x70] sm:$0xff] %v962
        %985 = vst [vmem:[%s216 + $0x78] sm:$0xff] %v967
        %s986 = sand.u32 %s118, 1
        %s987 = scalar_lea.sflag [#allocation4], %s986
        %s988 = sand.u32 %s118, 1
        %s989 = smul.addr %s988, 128
        %s990 = scalar_lea.vmem [#allocation5], %s989
        // Predicated region
        $region41: #{tpu_custom_call.1} parent=35 // pred_check
          %p991 = pneg %p128
        $region42: #{tpu_custom_call.1} parent=35 // pred_check_branch
          %993 = sbr.rel (%p991) target = $region44
        $region43: #{tpu_custom_call.1} parent=35 // pred_region
          %s994 = smul.u32 16, %s21
          %s996 = ssub.s32 2048, 2048
          %997 = vsyncadd %s987, %s996
          %s998 = smul.addr %s994, 128
          %s999 = scalar_lea.hbm %s4, %s998
          %s1000 = sshll.u32 %s990, 4
          %s1001 = int_to_ptr.vmem [resolvable:$true] %s1000
          %1006 = dma.vmem_to_hbm [thread:$0]  %s1001, 2048, %s999, %s987, 128, 128, 8
        $region44: #{tpu_custom_call.1} parent=35 // pred_fallthru
          _
      $region36: #{tpu_custom_call.1} parent=5 // pred_fallthru
        _
      %p1007 = scmp.le.s32.totalorder 2, %s16
      // Predicated region
      $region45: #{tpu_custom_call.1} parent=5 // pred_check
        %p1008 = pneg %p1007
      $region46: #{tpu_custom_call.1} parent=5 // pred_check_branch
        %1010 = sbr.rel (%p1008) target = $region48
      $region47: #{tpu_custom_call.1} parent=5 // pred_region
        %s1011 = ssub.s32 %s16, 2
        // Predicated region
        $region49: #{tpu_custom_call.1} parent=47 // pred_check
          %p1012 = pneg %p134
        $region50: #{tpu_custom_call.1} parent=47 // pred_check_branch
          %1014 = sbr.rel (%p1012) target = $region52
        $region51: #{tpu_custom_call.1} parent=47 // pred_region
          %s1015 = sand.u32 %s119, 1
          %s1016 = scalar_lea.sflag [#allocation4], %s1015
          %s1017 = sand.u32 %s119, 1
          %s1018 = smul.addr %s1017, 128
          %s1019 = scalar_lea.vmem [#allocation5], %s1018
          %1020 = dma.done %s1016, 2048
        $region52: #{tpu_custom_call.1} parent=47 // pred_fallthru
          _
      $region48: #{tpu_custom_call.1} parent=5 // pred_fallthru
        _
    $region6: #{tpu_custom_call.1} parent=1 // loop_footer
      %s20 = sadd.s32 1, %s16
    $region7: #{tpu_custom_call.1} parent=1 // loop_footer_branch
      %15 = sbr.rel target = $region3
    $region8: #{tpu_custom_call.1} parent=1 // loop_exit
      _
    %1021 = vsyncpa [#allocation3], 1
    %s1022 = scalar_lea.sflag [#allocation3], 1
    %1023 = vsyncpa %s1022, 1
    %1024 = vsyncpa [#allocation4], 1
    %s1025 = scalar_lea.sflag [#allocation4], 1
    %1026 = vsyncpa %s1025, 1

</llo_original>
